<compile_context>
chip_gen: v5e
topology: v5e:2x2
jax: 0.10.0
libtpu: 0.0.40
codegen_flags: <defaults>
</compile_context>

<pallas_src>
import numpy as np
import jax
import jax.numpy as jnp
from jax.experimental import pallas as pl
from jax.experimental.pallas import tpu as pltpu


# ----------------------------------------------------------------------------
# Pallas kernel: one (audio item i, T tile t) grid step vs ALL text items.
# ----------------------------------------------------------------------------
def _cross_align_kernel(audio_len_ref,             # scalar prefetch (SMEM): [bs] int32
                        a_ref, p_ref,              # inputs  (VMEM)
                        simmat_ref, colsum_ref):   # outputs (VMEM)
    i = pl.program_id(0)            # audio batch index
    t = pl.program_id(1)            # T-tile index

    a = a_ref[0]                    # [tile_t, D] audio frame embeddings of item i
    tile_t = a.shape[0]
    eps = jnp.float32(1e-12)

    # match_fn (cosine), audio side: per-row L2 normalisation (each tile visited once).
    a_n = a * jax.lax.rsqrt(jnp.sum(a * a, axis=-1, keepdims=True) + eps)

    # Fold the audio-frame validity mask into the matmul operand: one [tile_t, 1]
    # multiply on the D-wide tile instead of masking the [tile_t, C] product.
    # (Phrase validity is folded into p_ref in the wrapper.)
    # NOTE: multiplicative masking would propagate non-finite padding; padded inputs
    # are constructed as zeros here — switch to jnp.where if that ever changes.
    a_len = audio_len_ref[i]
    t_ids = t * tile_t + jax.lax.broadcasted_iota(jnp.int32, (tile_t, 1), 0)
    a_n = a_n * (t_ids < a_len).astype(jnp.float32)

    p = p_ref[...]                  # [D, C=bs*P] normalised+masked phrases, resident,
    a_mm = a_n.astype(p.dtype)      # already in MXU-native (K, N) weight layout.

    # [tile_t, C] cosine block: plain NN matmul, contraction over D.
    s = jax.lax.dot_general(a_mm, p, (((1,), (0,)), ((), ())),
                            preferred_element_type=jnp.float32)

    # sim_matrix[i, :, t_tile, :] written directly in the module's [bs, bs, T, P]
    # layout via per-j lane-aligned slices of s (P is a multiple of 128 in the padded
    # path) — no post-hoc XLA transpose of the largest tensor.
    bs = simmat_ref.shape[1]
    P = simmat_ref.shape[3]
    for j in range(bs):             # static & small; slices sit on lane boundaries
        simmat_ref[0, j] = s[:, j * P:(j + 1) * P].astype(simmat_ref.dtype)

    # Pooled-similarity numerator: masked column sums per (i, t) step, computed on
    # the MXU (ones-row matmul, M padded to 8 sublanes for layout friendliness)
    # instead of a cross-sublane XLU reduction of the full [tile_t, C] tile.  Each
    # step writes its own lane-dense [1, C] block -> no cross-step accumulator and
    # no sub-128-lane RMW; the per-j group sum / length divide is a wrapper epilogue.
    ones_m = jnp.ones((8, tile_t), dtype=s.dtype)
    col = jax.lax.dot_general(ones_m, s, (((1,), (0,)), ((), ())),
                              preferred_element_type=jnp.float32)
    colsum_ref[0] = col[:1]


# ----------------------------------------------------------------------------
# Wrapper
# ----------------------------------------------------------------------------
def _round_up(x, m):
    return ((x + m - 1) // m) * m


def _default_vmem_limit_bytes():
    """~96 MiB scoped VMEM on 128-MiB parts (v5e/v6e), ~48 MiB on 64-MiB v7x."""
    cap = 64 * 1024 * 1024
    try:
        cap = int(getattr(pltpu.get_tpu_info(), "vmem_capacity_bytes", cap))
    except Exception:
        pass
    return min(96 * 1024 * 1024, (cap * 3) // 4)


def cross_align_pallas(audio_emb, phrase_emb_b, audio_len, phr_num, *,
                       tile_t=None, use_bf16=False, pad_for_tpu=True,
                       vmem_limit_bytes=None):
    """audio_emb: [bs, T, D] f32; phrase_emb_b: [bs, P, D] f32 (zero padded);
       audio_len, phr_num: [bs] int32.
       Returns (sim [bs, bs] f32, sim_matrix [bs, bs, T, P])."""
    bs, T, D = audio_emb.shape
    _, P, _ = phrase_emb_b.shape
    audio_len = jnp.asarray(audio_len, jnp.int32)
    phr_num = jnp.asarray(phr_num, jnp.int32)

    # --- TPU alignment padding (in the wrapper, not a TODO): lane-dense P, sublane-
    #     aligned T, MXU-K-aligned D.  Padded rows/cols are zero + masked below.
    if pad_for_tpu:
        P_pad, T_pad, D_pad = _round_up(P, 128), _round_up(T, 8), _round_up(D, 128)
    else:
        P_pad, T_pad, D_pad = P, T, D
    if (T_pad, D_pad) != (T, D):
        audio_emb = jnp.pad(audio_emb, ((0, 0), (0, T_pad - T), (0, D_pad - D)))
    if (P_pad, D_pad) != (P, D):
        phrase_emb_b = jnp.pad(phrase_emb_b, ((0, 0), (0, P_pad - P), (0, D_pad - D)))
    C = bs * P_pad

    # --- Hoisted phrase-side work (done once, not per grid step): L2 normalisation,
    #     validity-mask folding (zero invalid phrase rows), and transpose to the
    #     MXU-native [D, C] (K, N) weight layout for the resident buffer.
    eps = jnp.float32(1e-12)
    p_flat = phrase_emb_b.reshape(C, D_pad)
    p_n = p_flat * jax.lax.rsqrt(jnp.sum(p_flat * p_flat, -1, keepdims=True) + eps)
    p_valid = (jnp.arange(P_pad)[None, :] < phr_num[:, None]).astype(jnp.float32)
    p_n = p_n * p_valid.reshape(C, 1)                  # fold phrase mask into operand
    p_nT = p_n.T                                       # [D, C]
    if use_bf16:
        p_nT = p_nT.astype(jnp.bfloat16)
    mat_dtype = jnp.bfloat16 if use_bf16 else jnp.float32
    mat_bytes = 2 if use_bf16 else 4
    phr_bytes = 2 if use_bf16 else 4

    if vmem_limit_bytes is None:
        vmem_limit_bytes = _default_vmem_limit_bytes()

    # --- T tiling: biggest tile (multiple of 256, then 128) that keeps the double-
    #     buffered audio / output tiles plus the resident phrase buffer in budget.
    if tile_t is None:
        resident = D_pad * C * phr_bytes

        def fits(tt):
            per_step = 2 * (tt * D_pad * 4 + bs * tt * P_pad * mat_bytes) + 2 * C * 4
            return resident + per_step <= int(vmem_limit_bytes * 0.85)

        tile_t = T_pad
        for cand in (1024, 768, 512, 256, 128):
            if T_pad % cand == 0 and fits(cand):
                tile_t = cand
                break
    assert T_pad % tile_t == 0, "tile_t must divide (padded) T"
    n_t = T_pad // tile_t

    def _call(single_buffer_phrases):
        phrase_kwargs = {}
        if single_buffer_phrases:
            # Constant-index resident block: no need to double-buffer it (v7x budget).
            phrase_kwargs["pipeline_mode"] = pl.Buffered(1)
        return pl.pallas_call(
            _cross_align_kernel,
            out_shape=(
                jax.ShapeDtypeStruct((bs, bs, T_pad, P_pad), mat_dtype),   # sim_matrix
                jax.ShapeDtypeStruct((bs, n_t, C), jnp.float32),           # column sums
            ),
            grid_spec=pltpu.PrefetchScalarGridSpec(
                num_scalar_prefetch=1,
                grid=(bs, n_t),
                in_specs=[
                    pl.BlockSpec((1, tile_t, D_pad), lambda i, t, al: (i, t, 0)),
                    pl.BlockSpec((D_pad, C), lambda i, t, al: (0, 0), **phrase_kwargs),
                ],
                out_specs=(
                    pl.BlockSpec((1, bs, tile_t, P_pad), lambda i, t, al: (i, 0, t, 0)),
                    pl.BlockSpec((1, 1, C), lambda i, t, al: (i, t, 0)),
                ),
            ),
            compiler_params=pltpu.CompilerParams(
                # No cross-step accumulator -> both grid axes are independent; v7x can
                # split either axis across its two TensorCores regardless of bs parity.
                dimension_semantics=("parallel", "parallel"),
                vmem_limit_bytes=int(vmem_limit_bytes)),
        )(audio_len, audio_emb, p_nT)

    try:
        sim_matrix_pad, colsums = _call(True)
    except Exception:           # fall back if this jax build rejects Buffered(1)
        sim_matrix_pad, colsums = _call(False)

    # --- Epilogue (tiny): per-(i, j) pooled masked mean over valid frames/phrases.
    sums = colsums.sum(axis=1).reshape(bs, bs, P_pad).sum(axis=-1)           # [bs, bs]
    # NOTE: denominator clamped to >= 1 (guards audio_len == 0 / phrases_num == 0).
    denom = jnp.maximum((audio_len[:, None] * phr_num[None, :]).astype(jnp.float32), 1.0)
    sim = sums / denom

    sim_matrix = sim_matrix_pad
    if (T_pad, P_pad) != (T, P):
        sim_matrix = sim_matrix[:, :, :T, :P]
    return sim, sim_matrix


# ----------------------------------------------------------------------------
# Synthetic (deterministic) sub-modules: audio / text encoders — plain-JAX glue
# ----------------------------------------------------------------------------
def audio_encoder(waveform, audio_len, W_a, b_a, frame_size):
    bs, n_samples = waveform.shape
    T = n_samples // frame_size
    frames = waveform.reshape(bs, T, frame_size)
    emb = jnp.tanh(frames @ W_a + b_a)            # [bs, T, D]
    return {"embedding": emb, "length": audio_len}


def text_encoder(phrases, phrases_len, emb_table, W_t, b_t):
    tok = emb_table[phrases]                      # [txt_num, L, De]
    token_emb = jnp.tanh(tok @ W_t + b_t)         # [txt_num, L, D]
    return {"token_emb": token_emb}


def pool_phrases_per_batch(token_emb, phrases_len, phrases_num_list, P_max):
    """Masked-mean over tokens -> phrase embedding, then regroup phrases per batch
    item (zero-padded to P_max).  Host-side glue only."""
    txt_num, L, D = token_emb.shape
    tok_mask = (jnp.arange(L)[None, :] < phrases_len[:, None]).astype(jnp.float32)
    phrase_emb = jnp.sum(token_emb * tok_mask[..., None], axis=1) / \
        jnp.maximum(phrases_len[:, None].astype(jnp.float32), 1.0)   # [txt_num, D]

    bs = len(phrases_num_list)
    out = jnp.zeros((bs, P_max, D), jnp.float32)
    start = 0
    for b in range(bs):
        n = phrases_num_list[b]
        out = out.at[b, :n].set(phrase_emb[start:start + n])
        start += n
    return out


# ----------------------------------------------------------------------------
# Pure-JAX reference of the cross-alignment (for correctness check)
# ----------------------------------------------------------------------------
def reference(audio_emb, phrase_emb_b, audio_len, phr_num):
    eps = 1e-12
    a_n = audio_emb * jax.lax.rsqrt(jnp.sum(audio_emb ** 2, -1, keepdims=True) + eps)
    p_n = phrase_emb_b * jax.lax.rsqrt(jnp.sum(phrase_emb_b ** 2, -1, keepdims=True) + eps)
    sm = jnp.einsum("itd,jpd->ijtp", a_n, p_n)
    T, P = sm.shape[2], sm.shape[3]
    t_mask = jnp.arange(T)[None, :] < audio_len[:, None]     # [bs, T]
    p_mask = jnp.arange(P)[None, :] < phr_num[:, None]       # [bs, P]
    mask = t_mask[:, None, :, None] & p_mask[None, :, None, :]
    sm = jnp.where(mask, sm, 0.0)
    denom = jnp.maximum((audio_len[:, None] * phr_num[None, :]).astype(jnp.float32), 1.0)
    sim = sm.sum((2, 3)) / denom
    return sim, sm


# ----------------------------------------------------------------------------
# Full forward (mirrors AudioTextCrossAlignByPhrase.forward)
# ----------------------------------------------------------------------------
def forward(input_dict, params, *, use_bf16=False):
    text_key = input_dict["text_key"]
    audio_out = audio_encoder(input_dict["waveform"], input_dict["waveform_len"],
                              params["W_a"], params["b_a"], params["frame_size"])
    txt_out = text_encoder(input_dict[text_key], input_dict[f"{text_key}_len"],
                           params["emb_table"], params["W_t"], params["b_t"])

    phrases_num_list = input_dict[f"{text_key}_num_list"]      # static python list
    P_max = max(phrases_num_list)
    phrase_emb_b = pool_phrases_per_batch(txt_out["token_emb"],
                                          input_dict[f"{text_key}_len"],
                                          phrases_num_list, P_max)

    audio_len = jnp.asarray(input_dict["audio_len"], jnp.int32)
    phr_num = jnp.asarray(phrases_num_list, jnp.int32)

    sim, sim_matrix = cross_align_pallas(audio_out["embedding"], phrase_emb_b,
                                         audio_len, phr_num, use_bf16=use_bf16)
    return {"sim": sim, "sim_matrix": sim_matrix}, (audio_out["embedding"], phrase_emb_b,
                                                    audio_len, phr_num)


if __name__ == "__main__":
    key = jax.random.PRNGKey(0)
    k1, k2, k3, k4, k5, k6, k7 = jax.random.split(key, 7)

    # Small, module-consistent shapes.
    bs = 2
    frame_size = 64
    T = 16                       # audio frames
    D = 32                       # shared embedding dim
    n_samples = T * frame_size
    vocab, L, De = 50, 8, 16     # text vocab / max phrase len / token embed dim
    phrases_num_list = [3, 2]    # phrases per batch item
    txt_num = sum(phrases_num_list)

    params = {
        "frame_size": frame_size,
        "W_a": 0.1 * jax.random.normal(k1, (frame_size, D), jnp.float32),
        "b_a": 0.01 * jax.random.normal(k2, (D,), jnp.float32),
        "emb_table": jax.random.normal(k3, (vocab, De), jnp.float32),
        "W_t": 0.1 * jax.random.normal(k4, (De, D), jnp.float32),
        "b_t": 0.01 * jax.random.normal(k5, (D,), jnp.float32),
    }

    input_dict = {
        "waveform": jax.random.normal(k6, (bs, n_samples), jnp.float32),
        "waveform_len": jnp.array([n_samples, 12 * frame_size], jnp.int32),
        "audio_len": [16, 12],                       # valid audio frames per item
        "phrases": jax.random.randint(k7, (txt_num, L), 0, vocab),
        "phrases_len": jnp.array([8, 5, 3, 6, 4], jnp.int32),
        "phrases_num_list": phrases_num_list,
        "text_key": "phrases",
    }

    # --- f32 path: exact check against pure-JAX reference ---
    out, (audio_emb, phrase_emb_b, audio_len, phr_num) = forward(input_dict, params)
    sim = jax.block_until_ready(out["sim"])
    sim_matrix = jax.block_until_ready(out["sim_matrix"])

    sim_ref, sm_ref = reference(audio_emb, phrase_emb_b, audio_len, phr_num)
    np.testing.assert_allclose(np.asarray(sim_matrix), np.asarray(sm_ref),
                               rtol=1e-5, atol=1e-5)
    np.testing.assert_allclose(np.asarray(sim), np.asarray(sim_ref),
                               rtol=1e-5, atol=1e-5)

    assert sim.shape == (bs, bs)
    assert sim_matrix.shape == (bs, bs, T, max(phrases_num_list))

    # --- bf16 path: bf16 MXU inputs AND bf16 sim_matrix store (looser tolerance) ---
    out_bf16, _ = forward(input_dict, params, use_bf16=True)
    sim_bf16 = jax.block_until_ready(out_bf16["sim"])
    sm_bf16 = jax.block_until_ready(out_bf16["sim_matrix"])
    np.testing.assert_allclose(np.asarray(sm_bf16.astype(jnp.float32)), np.asarray(sm_ref),
                               rtol=2e-2, atol=2e-2)
    np.testing.assert_allclose(np.asarray(sim_bf16), np.asarray(sim_ref),
                               rtol=2e-2, atol=2e-2)

    print("KERNEL_OK")
</pallas_src>

<mosaic_0001>
module attributes {stable_mosaic.version = 11 : i64} {
  func.func @_cross_align_kernel(%arg0: i32, %arg1: i32, %arg2: memref<2xi32, #tpu.memory_space<smem>>, %arg3: memref<1x16x128xf32, #tpu.memory_space<vmem>>, %arg4: memref<128x256xf32, #tpu.memory_space<vmem>>, %arg5: memref<1x2x16x128xf32, #tpu.memory_space<vmem>>, %arg6: memref<1x1x256xf32, #tpu.memory_space<vmem>>) attributes {dimension_semantics = [#tpu.dimension_semantics<parallel>, #tpu.dimension_semantics<parallel>], iteration_bounds = array<i64: 2, 1>, scalar_prefetch = 1 : i64, scratch_operands = 0 : i64, tpu.core_type = #tpu.core_type<tc>, window_params = [{transform_indices = @transform_0, window_bounds = array<i64: 1, 16, 128>}, {pipeline_mode = #tpu.pipeline_mode<synchronous>, transform_indices = @transform_1, window_bounds = array<i64: 128, 256>}, {transform_indices = @transform_2, window_bounds = array<i64: 1, 2, 16, 128>}, {transform_indices = @transform_3, window_bounds = array<i64: 1, 1, 256>}]} {
    %c0 = arith.constant 0 : index
    %c0_0 = arith.constant 0 : index
    %c0_1 = arith.constant 0 : index
    %0 = vector.load %arg3[%c0, %c0_0, %c0_1] : memref<1x16x128xf32, #tpu.memory_space<vmem>>, vector<1x16x128xf32>
    %1 = vector.shape_cast %0 : vector<1x16x128xf32> to vector<16x128xf32>
    %2 = arith.mulf %1, %1 : vector<16x128xf32>
    %cst = arith.constant dense<0.000000e+00> : vector<16xf32>
    %3 = vector.multi_reduction <add>, %2, %cst [1] : vector<16x128xf32> to vector<16xf32>
    %4 = vector.shape_cast %3 : vector<16xf32> to vector<16x1xf32>
    %cst_2 = arith.constant 9.99999996E-13 : f32
    %5 = vector.broadcast %cst_2 : f32 to vector<16x1xf32>
    %6 = arith.addf %4, %5 : vector<16x1xf32>
    %7 = math.rsqrt %6 : vector<16x1xf32>
    %8 = vector.broadcast %7 : vector<16x1xf32> to vector<16x128xf32>
    %9 = arith.mulf %1, %8 : vector<16x128xf32>
    %10 = arith.index_cast %arg0 : i32 to index
    %11 = memref.load %arg2[%10] : memref<2xi32, #tpu.memory_space<smem>>
    %c16_i32 = arith.constant 16 : i32
    %12 = arith.muli %arg1, %c16_i32 : i32
    %13 = tpu.iota {dimensions = array<i32: 0>} : vector<16x1xi32>
    %14 = vector.broadcast %12 : i32 to vector<16x1xi32>
    %15 = arith.addi %14, %13 : vector<16x1xi32>
    %16 = vector.broadcast %11 : i32 to vector<16x1xi32>
    %17 = arith.cmpi slt, %15, %16 : vector<16x1xi32>
    %18 = arith.extui %17 : vector<16x1xi1> to vector<16x1xi32>
    %19 = arith.sitofp %18 : vector<16x1xi32> to vector<16x1xf32>
    %20 = vector.broadcast %19 : vector<16x1xf32> to vector<16x128xf32>
    %21 = arith.mulf %9, %20 : vector<16x128xf32>
    %c0_3 = arith.constant 0 : index
    %c0_4 = arith.constant 0 : index
    %22 = vector.load %arg4[%c0_3, %c0_4] : memref<128x256xf32, #tpu.memory_space<vmem>>, vector<128x256xf32>
    %cst_5 = arith.constant dense<0.000000e+00> : vector<16x256xf32>
    %23 = tpu.matmul %21, %22, %cst_5 {dimension_numbers = #tpu.dot_dimension_numbers<[1], [0], [0], [1], [0, 0, 1, 1], [], []>} : vector<16x128xf32>, vector<128x256xf32>, vector<16x256xf32> -> vector<16x256xf32>
    %24 = vector.extract_strided_slice %23 {offsets = [0, 0], sizes = [16, 128], strides = [1, 1]} : vector<16x256xf32> to vector<16x128xf32>
    %c0_6 = arith.constant 0 : index
    %c0_7 = arith.constant 0 : index
    %c0_8 = arith.constant 0 : index
    %c0_9 = arith.constant 0 : index
    %25 = vector.load %arg5[%c0_6, %c0_7, %c0_8, %c0_9] : memref<1x2x16x128xf32, #tpu.memory_space<vmem>>, vector<1x1x16x128xf32>
    %26 = vector.shape_cast %25 : vector<1x1x16x128xf32> to vector<16x128xf32>
    %27 = vector.shape_cast %24 : vector<16x128xf32> to vector<1x1x16x128xf32>
    tpu.vector_store %arg5[%c0_6, %c0_7, %c0_8, %c0_9], %27 {strides = array<i32>} : memref<1x2x16x128xf32, #tpu.memory_space<vmem>>, vector<1x1x16x128xf32>,
    %28 = vector.extract_strided_slice %23 {offsets = [0, 128], sizes = [16, 128], strides = [1, 1]} : vector<16x256xf32> to vector<16x128xf32>
    %c0_10 = arith.constant 0 : index
    %c1 = arith.constant 1 : index
    %c0_11 = arith.constant 0 : index
    %c0_12 = arith.constant 0 : index
    %29 = vector.load %arg5[%c0_10, %c1, %c0_11, %c0_12] : memref<1x2x16x128xf32, #tpu.memory_space<vmem>>, vector<1x1x16x128xf32>
    %30 = vector.shape_cast %29 : vector<1x1x16x128xf32> to vector<16x128xf32>
    %31 = vector.shape_cast %28 : vector<16x128xf32> to vector<1x1x16x128xf32>
    tpu.vector_store %arg5[%c0_10, %c1, %c0_11, %c0_12], %31 {strides = array<i32>} : memref<1x2x16x128xf32, #tpu.memory_space<vmem>>, vector<1x1x16x128xf32>,
    %cst_13 = arith.constant 1.000000e+00 : f32
    %32 = vector.broadcast %cst_13 : f32 to vector<8x16xf32>
    %cst_14 = arith.constant dense<0.000000e+00> : vector<8x256xf32>
    %33 = tpu.matmul %32, %23, %cst_14 {dimension_numbers = #tpu.dot_dimension_numbers<[1], [0], [0], [1], [0, 0, 1, 1], [], []>} : vector<8x16xf32>, vector<16x256xf32>, vector<8x256xf32> -> vector<8x256xf32>
    %34 = vector.extract_strided_slice %33 {offsets = [0, 0], sizes = [1, 256], strides = [1, 1]} : vector<8x256xf32> to vector<1x256xf32>
    %c0_15 = arith.constant 0 : index
    %c0_16 = arith.constant 0 : index
    %c0_17 = arith.constant 0 : index
    %35 = vector.load %arg6[%c0_15, %c0_16, %c0_17] : memref<1x1x256xf32, #tpu.memory_space<vmem>>, vector<1x1x256xf32>
    %36 = vector.shape_cast %35 : vector<1x1x256xf32> to vector<1x256xf32>
    %37 = vector.shape_cast %34 : vector<1x256xf32> to vector<1x1x256xf32>
    tpu.vector_store %arg6[%c0_15, %c0_16, %c0_17], %37 {strides = array<i32>} : memref<1x1x256xf32, #tpu.memory_space<vmem>>, vector<1x1x256xf32>,
    return
  }
  func.func @transform_0(%arg0: i32, %arg1: i32, %arg2: memref<2xi32, #tpu.memory_space<smem>>) -> (i32, i32, i32) {
    %c0_i32 = arith.constant 0 : i32
    %c0_i32_0 = arith.constant 0 : i32
    return %arg0, %arg1, %c0_i32 : i32, i32, i32
  }
  func.func @transform_1(%arg0: i32, %arg1: i32, %arg2: memref<2xi32, #tpu.memory_space<smem>>) -> (i32, i32) {
    %c0_i32 = arith.constant 0 : i32
    %c0_i32_0 = arith.constant 0 : i32
    %c0_i32_1 = arith.constant 0 : i32
    return %c0_i32, %c0_i32_0 : i32, i32
  }
  func.func @transform_2(%arg0: i32, %arg1: i32, %arg2: memref<2xi32, #tpu.memory_space<smem>>) -> (i32, i32, i32, i32) {
    %c0_i32 = arith.constant 0 : i32
    %c0_i32_0 = arith.constant 0 : i32
    %c0_i32_1 = arith.constant 0 : i32
    return %arg0, %c0_i32, %arg1, %c0_i32_0 : i32, i32, i32, i32
  }
  func.func @transform_3(%arg0: i32, %arg1: i32, %arg2: memref<2xi32, #tpu.memory_space<smem>>) -> (i32, i32, i32) {
    %c0_i32 = arith.constant 0 : i32
    %c0_i32_0 = arith.constant 0 : i32
    return %arg0, %arg1, %c0_i32 : i32, i32, i32
  }
}

module attributes {stable_mosaic.version = 11 : i64} {
  func.func @_cross_align_kernel(%arg0: i32, %arg1: i32, %arg2: memref<2xi32, #tpu.memory_space<smem>>, %arg3: memref<1x16x128xf32, #tpu.memory_space<vmem>>, %arg4: memref<128x256xf32, #tpu.memory_space<vmem>>, %arg5: memref<1x2x16x128xf32, #tpu.memory_space<vmem>>, %arg6: memref<1x1x256xf32, #tpu.memory_space<vmem>>) attributes {dimension_semantics = [#tpu.dimension_semantics<parallel>, #tpu.dimension_semantics<parallel>], iteration_bounds = array<i64: 2, 1>, scalar_prefetch = 1 : i64, scratch_operands = 0 : i64, tpu.core_type = #tpu.core_type<tc>, window_params = [{transform_indices = @transform_0, window_bounds = array<i64: 1, 16, 128>}, {pipeline_mode = #tpu.pipeline_mode<synchronous>, transform_indices = @transform_1, window_bounds = array<i64: 128, 256>}, {transform_indices = @transform_2, window_bounds = array<i64: 1, 2, 16, 128>}, {transform_indices = @transform_3, window_bounds = array<i64: 1, 1, 256>}]} {
    %c0 = arith.constant 0 : index
    %c0_0 = arith.constant 0 : index
    %c0_1 = arith.constant 0 : index
    %0 = vector.load %arg3[%c0, %c0_0, %c0_1] : memref<1x16x128xf32, #tpu.memory_space<vmem>>, vector<1x16x128xf32>
    %1 = vector.shape_cast %0 : vector<1x16x128xf32> to vector<16x128xf32>
    %2 = arith.mulf %1, %1 : vector<16x128xf32>
    %cst = arith.constant dense<0.000000e+00> : vector<16xf32>
    %3 = vector.multi_reduction <add>, %2, %cst [1] : vector<16x128xf32> to vector<16xf32>
    %4 = vector.shape_cast %3 : vector<16xf32> to vector<16x1xf32>
    %cst_2 = arith.constant 9.99999996E-13 : f32
    %5 = vector.broadcast %cst_2 : f32 to vector<16x1xf32>
    %6 = arith.addf %4, %5 : vector<16x1xf32>
    %7 = math.rsqrt %6 : vector<16x1xf32>
    %8 = vector.broadcast %7 : vector<16x1xf32> to vector<16x128xf32>
    %9 = arith.mulf %1, %8 : vector<16x128xf32>
    %10 = arith.index_cast %arg0 : i32 to index
    %11 = memref.load %arg2[%10] : memref<2xi32, #tpu.memory_space<smem>>
    %c16_i32 = arith.constant 16 : i32
    %12 = arith.muli %arg1, %c16_i32 : i32
    %13 = tpu.iota {dimensions = array<i32: 0>} : vector<16x1xi32>
    %14 = vector.broadcast %12 : i32 to vector<16x1xi32>
    %15 = arith.addi %14, %13 : vector<16x1xi32>
    %16 = vector.broadcast %11 : i32 to vector<16x1xi32>
    %17 = arith.cmpi slt, %15, %16 : vector<16x1xi32>
    %18 = arith.extui %17 : vector<16x1xi1> to vector<16x1xi32>
    %19 = arith.sitofp %18 : vector<16x1xi32> to vector<16x1xf32>
    %20 = vector.broadcast %19 : vector<16x1xf32> to vector<16x128xf32>
    %21 = arith.mulf %9, %20 : vector<16x128xf32>
    %c0_3 = arith.constant 0 : index
    %c0_4 = arith.constant 0 : index
    %22 = vector.load %arg4[%c0_3, %c0_4] : memref<128x256xf32, #tpu.memory_space<vmem>>, vector<128x256xf32>
    %cst_5 = arith.constant dense<0.000000e+00> : vector<16x256xf32>
    %23 = tpu.matmul %21, %22, %cst_5 {dimension_numbers = #tpu.dot_dimension_numbers<[1], [0], [0], [1], [0, 0, 1, 1], [], []>} : vector<16x128xf32>, vector<128x256xf32>, vector<16x256xf32> -> vector<16x256xf32>
    %24 = vector.extract_strided_slice %23 {offsets = [0, 0], sizes = [16, 128], strides = [1, 1]} : vector<16x256xf32> to vector<16x128xf32>
    %c0_6 = arith.constant 0 : index
    %c0_7 = arith.constant 0 : index
    %c0_8 = arith.constant 0 : index
    %c0_9 = arith.constant 0 : index
    %25 = vector.load %arg5[%c0_6, %c0_7, %c0_8, %c0_9] : memref<1x2x16x128xf32, #tpu.memory_space<vmem>>, vector<1x1x16x128xf32>
    %26 = vector.shape_cast %25 : vector<1x1x16x128xf32> to vector<16x128xf32>
    %27 = vector.shape_cast %24 : vector<16x128xf32> to vector<1x1x16x128xf32>
    tpu.vector_store %arg5[%c0_6, %c0_7, %c0_8, %c0_9], %27 {strides = array<i32>} : memref<1x2x16x128xf32, #tpu.memory_space<vmem>>, vector<1x1x16x128xf32>,
    %28 = vector.extract_strided_slice %23 {offsets = [0, 128], sizes = [16, 128], strides = [1, 1]} : vector<16x256xf32> to vector<16x128xf32>
    %c0_10 = arith.constant 0 : index
    %c1 = arith.constant 1 : index
    %c0_11 = arith.constant 0 : index
    %c0_12 = arith.constant 0 : index
    %29 = vector.load %arg5[%c0_10, %c1, %c0_11, %c0_12] : memref<1x2x16x128xf32, #tpu.memory_space<vmem>>, vector<1x1x16x128xf32>
    %30 = vector.shape_cast %29 : vector<1x1x16x128xf32> to vector<16x128xf32>
    %31 = vector.shape_cast %28 : vector<16x128xf32> to vector<1x1x16x128xf32>
    tpu.vector_store %arg5[%c0_10, %c1, %c0_11, %c0_12], %31 {strides = array<i32>} : memref<1x2x16x128xf32, #tpu.memory_space<vmem>>, vector<1x1x16x128xf32>,
    %cst_13 = arith.constant 1.000000e+00 : f32
    %32 = vector.broadcast %cst_13 : f32 to vector<8x16xf32>
    %cst_14 = arith.constant dense<0.000000e+00> : vector<8x256xf32>
    %33 = tpu.matmul %32, %23, %cst_14 {dimension_numbers = #tpu.dot_dimension_numbers<[1], [0], [0], [1], [0, 0, 1, 1], [], []>} : vector<8x16xf32>, vector<16x256xf32>, vector<8x256xf32> -> vector<8x256xf32>
    %34 = vector.extract_strided_slice %33 {offsets = [0, 0], sizes = [1, 256], strides = [1, 1]} : vector<8x256xf32> to vector<1x256xf32>
    %c0_15 = arith.constant 0 : index
    %c0_16 = arith.constant 0 : index
    %c0_17 = arith.constant 0 : index
    %35 = vector.load %arg6[%c0_15, %c0_16, %c0_17] : memref<1x1x256xf32, #tpu.memory_space<vmem>>, vector<1x1x256xf32>
    %36 = vector.shape_cast %35 : vector<1x1x256xf32> to vector<1x256xf32>
    %37 = vector.shape_cast %34 : vector<1x256xf32> to vector<1x1x256xf32>
    tpu.vector_store %arg6[%c0_15, %c0_16, %c0_17], %37 {strides = array<i32>} : memref<1x1x256xf32, #tpu.memory_space<vmem>>, vector<1x1x256xf32>,
    return
  }
  func.func @transform_0(%arg0: i32, %arg1: i32, %arg2: memref<2xi32, #tpu.memory_space<smem>>) -> (i32, i32, i32) {
    %c0_i32 = arith.constant 0 : i32
    %c0_i32_0 = arith.constant 0 : i32
    return %arg0, %arg1, %c0_i32 : i32, i32, i32
  }
  func.func @transform_1(%arg0: i32, %arg1: i32, %arg2: memref<2xi32, #tpu.memory_space<smem>>) -> (i32, i32) {
    %c0_i32 = arith.constant 0 : i32
    %c0_i32_0 = arith.constant 0 : i32
    %c0_i32_1 = arith.constant 0 : i32
    return %c0_i32, %c0_i32_0 : i32, i32
  }
  func.func @transform_2(%arg0: i32, %arg1: i32, %arg2: memref<2xi32, #tpu.memory_space<smem>>) -> (i32, i32, i32, i32) {
    %c0_i32 = arith.constant 0 : i32
    %c0_i32_0 = arith.constant 0 : i32
    %c0_i32_1 = arith.constant 0 : i32
    return %arg0, %c0_i32, %arg1, %c0_i32_0 : i32, i32, i32, i32
  }
  func.func @transform_3(%arg0: i32, %arg1: i32, %arg2: memref<2xi32, #tpu.memory_space<smem>>) -> (i32, i32, i32) {
    %c0_i32 = arith.constant 0 : i32
    %c0_i32_0 = arith.constant 0 : i32
    return %arg0, %arg1, %c0_i32 : i32, i32, i32
  }
}

</mosaic_0001>

<llo_original>
// kernel: tpu_custom_call.1
$region0: #{tpu_custom_call.1}
  #allocation0 [shape = 'u32[]', space=smem, size = 0x4, offset = 0x4, fixed_abs, tag = 'smem constant byte address 0x4 - core index']
  #allocation1 [shape = 'u32[72,128]{1,0:T(1,128)}', space=vmem, size = 0x9000, scoped, tag = 'internal scratch']
  #allocation2 [shape = 's32[1]{0}', space=sflag, size = 0x4, scoped, tag = 'scoped memory for tpu_custom_call.1']
  #allocation3 [shape = 'u8[512]{0}', space=smem, size = 0x200, scoped, tag = 'prefetched SMEM operand 0']
  %s0 = inlined_call_operand.hbm [shape: s32[2], index: 0, kind: input, shape index: {}]
  %s1 = inlined_call_operand.hbm [shape: f32[2,16,128], index: 1, kind: input, shape index: {}]
  %s2 = inlined_call_operand.hbm [shape: f32[128,256], index: 2, kind: input, shape index: {}]
  %s3 = inlined_call_operand.hbm [shape: f32[2,2,16,128], index: 3, kind: output, shape index: {0}]
  %s4 = inlined_call_operand.hbm [shape: f32[2,1,256], index: 4, kind: output, shape index: {1}]
  %5 = xla_tuple %s3, %s4
  %s6 = sld [smem:[#allocation0]]
  $region57: #{tpu_custom_call.1} parent=0
    _
  %s8 = ssub.s32 1, %s6
  %s9 = scalar_select 0, %s8, %s6
  %s11 = sshll.u32 %s0, 4
  %s12 = int_to_ptr.hbm [resolvable:$true] %s11
  %14 = dma.hbm_to_smem %s12, 16, [#allocation3], [#allocation2]
  %16 = dma.done [#allocation2], 16
  %17 = sfence
  $region1: #{tpu_custom_call.1} parent=0
    #allocation4 [shape = 'u8[16384]{0}', space=vmem, size = 0x4000, scoped, tag = 'input window, operand 1']
    #allocation5 [shape = 's32[2]{0}', space=sflag, size = 0x8, scoped, tag = 'scoped memory for tpu_custom_call.1']
    #allocation6 [shape = 's32[2]{0}', space=sflag, size = 0x8, scoped, tag = 'scoped memory for tpu_custom_call.1']
    #allocation7 [shape = 'u8[131072]{0}', space=vmem, size = 0x20000, scoped, tag = 'input window, operand 2, single buffered']
    #allocation8 [shape = 's32[1]{0}', space=sflag, size = 0x4, scoped, tag = 'scoped memory for tpu_custom_call.1']
    #allocation9 [shape = 'u8[32768]{0}', space=vmem, size = 0x8000, scoped, tag = 'output window, operand 0']
    #allocation10 [shape = 'u8[2048]{0}', space=vmem, size = 0x800, scoped, tag = 'output window, operand 1']
    #allocation11 [shape = 's32[2]{0}', space=sflag, size = 0x8, scoped, tag = 'scoped memory for tpu_custom_call.1']
    %18 = vsyncpa [#allocation5], 0
    %s19 = scalar_lea.sflag [#allocation5], 1
    %20 = vsyncpa %s19, 0
    %21 = vsyncpa [#allocation8], 0
    %22 = vsyncpa [#allocation6], 0
    %s23 = scalar_lea.sflag [#allocation6], 1
    %24 = vsyncpa %s23, 0
    %25 = vsyncpa [#allocation11], 0
    %s26 = scalar_lea.sflag [#allocation11], 1
    %27 = vsyncpa %s26, 0
    loop: start=0, step=1, limit=4
    $region2: #{tpu_custom_call.1} parent=1 // loop_pre_header
      _
    $region3: #{tpu_custom_call.1} parent=1 // loop_header
      %s29 = sphi 0, %s33
      %p30 = scmp.ge.s32.totalorder %s29, 4
      %s36 = sphi 0, %s48
      %s37 = sphi 0, %s44
      %s38 = sphi 0, %s36
      %s39 = sphi 0, %s37
      %s40 = sphi 0, %s38
      %s41 = sphi 0, %s39
      %s53 = sphi 0, %s55
      %s56 = sphi 0, %s53
      %s57 = sphi 0, %s56
      %s73 = sphi 0, %s57
      %s77 = sphi 0, %s77
      %s79 = sphi 0, %s77
      %s80 = sphi 0, %s79
      %s94 = sphi 0, %s80
      %s102 = sphi 0, %s104
      %s105 = sphi 0, %s102
      %s106 = sphi 0, %s105
      %s122 = sphi 0, %s106
      %s130 = sphi 0, %s132
      %s133 = sphi 0, %s130
      %s134 = sphi 0, %s133
      %s150 = sphi 0, %s134
    $region4: #{tpu_custom_call.1} parent=1 // loop_header_branch
      %32 = sbr.rel (%p30) target = $region8
    $region5: #{tpu_custom_call.1} parent=1 // loop_body
      %s34 = ssub.s32 %s29, 1
      %s35 = ssub.s32 %s29, 2
      %s42 = sadd.s32 1, %s37
      %p43 = scmp.ge.s32.totalorder %s42, 1
      %s44 = scalar_select %p43, 0, %s42
      %s45 = sadd.s32 1, %s36
      %s46 = scalar_select %p43, %s45, %s36
      %p47 = scmp.ge.s32.totalorder %s46, 2
      %s48 = scalar_select %p47, 0, %s46
      %s49 = ssub.s32 %s36, %s48
      %s50 = ssub.s32 %s37, %s44
      %s51 = sor.u32 %s49, %s50
      %p52 = scmp.eq.s32.totalorder %s51, 0
      %s54 = sadd.s32 %s53, 1
      %s55 = scalar_select %p52, %s53, %s54
      %p58 = pneg %p52
      %p59 = scmp.eq.s32.totalorder %s29, 1
      %p60 = por %p58, %p59
      %p61 = scmp.ne.s32.totalorder %s53, %s56
      %p62 = scmp.eq.s32.totalorder %s29, 0
      %p63 = por %p61, %p62
      %p64 = scmp.ne.s32.totalorder %s53, %s56
      %p65 = scmp.eq.s32.totalorder %s34, 1
      %p66 = por %p64, %p65
      %p67 = scmp.ne.s32.totalorder %s56, %s57
      %p68 = scmp.eq.s32.totalorder %s34, 0
      %p69 = por %p67, %p68
      %p70 = scmp.ne.s32.totalorder %s56, %s57
      %p71 = scmp.eq.s32.totalorder %s35, 1
      %p72 = por %p70, %p71
      %p74 = scmp.ne.s32.totalorder %s57, %s73
      %p75 = scmp.eq.s32.totalorder %s35, 0
      %p76 = por %p74, %p75
      %s78 = sadd.s32 %s77, 1
      %p81 = scmp.eq.s32.totalorder %s29, 1
      %p82 = scmp.ne.s32.totalorder %s77, %s79
      %p83 = scmp.eq.s32.totalorder %s29, 0
      %p84 = por %p82, %p83
      %p85 = scmp.ne.s32.totalorder %s77, %s79
      %p86 = scmp.eq.s32.totalorder %s34, 1
      %p87 = por %p85, %p86
      %p88 = scmp.ne.s32.totalorder %s79, %s80
      %p89 = scmp.eq.s32.totalorder %s34, 0
      %p90 = por %p88, %p89
      %p91 = scmp.ne.s32.totalorder %s79, %s80
      %p92 = scmp.eq.s32.totalorder %s35, 1
      %p93 = por %p91, %p92
      %p95 = scmp.ne.s32.totalorder %s80, %s94
      %p96 = scmp.eq.s32.totalorder %s35, 0
      %p97 = por %p95, %p96
      %s98 = ssub.s32 %s36, %s48
      %s99 = ssub.s32 %s37, %s44
      %s100 = sor.u32 %s98, %s99
      %p101 = scmp.eq.s32.totalorder %s100, 0
      %s103 = sadd.s32 %s102, 1
      %s104 = scalar_select %p101, %s102, %s103
      %p107 = pneg %p101
      %p108 = scmp.eq.s32.totalorder %s29, 1
      %p109 = por %p107, %p108
      %p110 = scmp.ne.s32.totalorder %s102, %s105
      %p111 = scmp.eq.s32.totalorder %s29, 0
      %p112 = por %p110, %p111
      %p113 = scmp.ne.s32.totalorder %s102, %s105
      %p114 = scmp.eq.s32.totalorder %s34, 1
      %p115 = por %p113, %p114
      %p116 = scmp.ne.s32.totalorder %s105, %s106
      %p117 = scmp.eq.s32.totalorder %s34, 0
      %p118 = por %p116, %p117
      %p119 = scmp.ne.s32.totalorder %s105, %s106
      %p120 = scmp.eq.s32.totalorder %s35, 1
      %p121 = por %p119, %p120
      %p123 = scmp.ne.s32.totalorder %s106, %s122
      %p124 = scmp.eq.s32.totalorder %s35, 0
      %p125 = por %p123, %p124
      %s126 = ssub.s32 %s36, %s48
      %s127 = ssub.s32 %s37, %s44
      %s128 = sor.u32 %s126, %s127
      %p129 = scmp.eq.s32.totalorder %s128, 0
      %s131 = sadd.s32 %s130, 1
      %s132 = scalar_select %p129, %s130, %s131
      %p135 = pneg %p129
      %p136 = scmp.eq.s32.totalorder %s29, 1
      %p137 = por %p135, %p136
      %p138 = scmp.ne.s32.totalorder %s130, %s133
      %p139 = scmp.eq.s32.totalorder %s29, 0
      %p140 = por %p138, %p139
      %p141 = scmp.ne.s32.totalorder %s130, %s133
      %p142 = scmp.eq.s32.totalorder %s34, 1
      %p143 = por %p141, %p142
      %p144 = scmp.ne.s32.totalorder %s133, %s134
      %p145 = scmp.eq.s32.totalorder %s34, 0
      %p146 = por %p144, %p145
      %p147 = scmp.ne.s32.totalorder %s133, %s134
      %p148 = scmp.eq.s32.totalorder %s35, 1
      %p149 = por %p147, %p148
      %p151 = scmp.ne.s32.totalorder %s134, %s150
      %p152 = scmp.eq.s32.totalorder %s35, 0
      %p153 = por %p151, %p152
      %p154 = scmp.le.s32.totalorder 1, %s29
      %p155 = scmp.lt.s32.totalorder %s29, 3
      %p156 = pnand %p154, %p155
      %p157 = pneg %p156
      // Predicated region
      $region9: #{tpu_custom_call.1} parent=5 // pred_check
        _
      $region10: #{tpu_custom_call.1} parent=5 // pred_check_branch
        %159 = sbr.rel (%p156) target = $region12
      $region11: #{tpu_custom_call.1} parent=5 // pred_region
        %s160 = ssub.s32 %s29, 1
        // Predicated region
        $region13: #{tpu_custom_call.1} parent=11 // pred_check
          %p161 = pneg %p90
        $region14: #{tpu_custom_call.1} parent=11 // pred_check_branch
          %163 = sbr.rel (%p161) target = $region16
        $region15: #{tpu_custom_call.1} parent=11 // pred_region
          %165 = vsyncadd [#allocation8], 0
          %s166 = sshll.u32 %s2, 4
          %s167 = int_to_ptr.hbm [resolvable:$true] %s166
          %s168 = sshll.u32 [#allocation7], 4
          %s169 = int_to_ptr.vmem [resolvable:$true] %s168
          %174 = dma.hbm_to_vmem [thread:$0]  %s167, 4096, %s169, [#allocation8], 256, 256, 16
        $region16: #{tpu_custom_call.1} parent=11 // pred_fallthru
          _
      $region12: #{tpu_custom_call.1} parent=5 // pred_fallthru
        _
      %p175 = scmp.lt.s32.totalorder %s29, 2
      // Predicated region
      $region17: #{tpu_custom_call.1} parent=5 // pred_check
        %p176 = pneg %p175
      $region18: #{tpu_custom_call.1} parent=5 // pred_check_branch
        %178 = sbr.rel (%p176) target = $region20
      $region19: #{tpu_custom_call.1} parent=5 // pred_region
        // Predicated region
        $region21: #{tpu_custom_call.1} parent=19 // pred_check
          %p179 = pneg %p63
        $region22: #{tpu_custom_call.1} parent=19 // pred_check_branch
          %181 = sbr.rel (%p179) target = $region24
        $region23: #{tpu_custom_call.1} parent=19 // pred_region
          %s182 = sand.u32 %s53, 1
          %s183 = scalar_lea.sflag [#allocation5], %s182
          %s184 = sand.u32 %s53, 1
          %s185 = smul.addr %s184, 16
          %s186 = scalar_lea.vmem [#allocation4], %s185
          %s187 = smul.u32 2, %s37
          %189 = vsyncadd %s183, 0
          %s190 = smul.addr %s36, 2
          %s191 = sadd.s32 %s187, %s190
          %s192 = smul.addr %s191, 8
          %s193 = scalar_lea.hbm %s1, %s192
          %s194 = sshll.u32 %s193, 4
          %s195 = int_to_ptr.hbm [resolvable:$true] %s194
          %s196 = sshll.u32 %s186, 4
          %s197 = int_to_ptr.vmem [resolvable:$true] %s196
          %202 = dma.hbm_to_vmem [thread:$0]  %s195, 256, %s197, %s183, 128, 128, 8
        $region24: #{tpu_custom_call.1} parent=19 // pred_fallthru
          _
      $region20: #{tpu_custom_call.1} parent=5 // pred_fallthru
        _
      %p203 = scmp.le.s32.totalorder 1, %s29
      %p204 = scmp.lt.s32.totalorder %s29, 3
      %p205 = pnand %p203, %p204
      %p206 = pneg %p205
      // Predicated region
      $region25: #{tpu_custom_call.1} parent=5 // pred_check
        _
      $region26: #{tpu_custom_call.1} parent=5 // pred_check_branch
        %208 = sbr.rel (%p205) target = $region28
      $region27: #{tpu_custom_call.1} parent=5 // pred_region
        %s209 = ssub.s32 %s29, 1
        %s210 = sand.u32 %s56, 1
        %s211 = scalar_lea.sflag [#allocation5], %s210
        %s212 = sand.u32 %s56, 1
        %s213 = smul.addr %s212, 16
        %s214 = scalar_lea.vmem [#allocation4], %s213
        // Predicated region
        $region29: #{tpu_custom_call.1} parent=27 // pred_check
          %p215 = pneg %p69
        $region30: #{tpu_custom_call.1} parent=27 // pred_check_branch
          %217 = sbr.rel (%p215) target = $region32
        $region31: #{tpu_custom_call.1} parent=27 // pred_region
          %219 = dma.done %s211, 256
        $region32: #{tpu_custom_call.1} parent=27 // pred_fallthru
          _
        // Predicated region
        $region33: #{tpu_custom_call.1} parent=27 // pred_check
          %p220 = pneg %p90
        $region34: #{tpu_custom_call.1} parent=27 // pred_check_branch
          %222 = sbr.rel (%p220) target = $region36
        $region35: #{tpu_custom_call.1} parent=27 // pred_region
          %224 = dma.done [#allocation8], 4096
        $region36: #{tpu_custom_call.1} parent=27 // pred_fallthru
          _
        %s225 = sand.u32 %s56, 1
        %s226 = scalar_lea.sflag [#allocation5], %s225
        %s227 = sand.u32 %s56, 1
        %s228 = smul.addr %s227, 16
        %s229 = scalar_lea.vmem [#allocation4], %s228
        %p230 = pneg %p69
        %p231 = pneg %p66
        %p232 = pneg %p90
        %p233 = pneg %p87
        %p234 = pneg %p118
        %p235 = pneg %p115
        %s236 = sand.u32 %s105, 1
        %s237 = scalar_lea.sflag [#allocation6], %s236
        %s238 = sand.u32 %s105, 1
        %s239 = smul.addr %s238, 32
        %s240 = scalar_lea.vmem [#allocation9], %s239
        %p241 = pneg %p146
        %p242 = pneg %p143
        %s243 = sand.u32 %s133, 1
        %s244 = scalar_lea.sflag [#allocation11], %s243
        %s245 = sand.u32 %s133, 1
        %s246 = smul.addr %s245, 2
        %s247 = scalar_lea.vmem [#allocation10], %s246
        %s248 = smul.u32 2, %s39
        %s249 = smul.u32 2, %s39
        %v250 = vld [vmem:[%s214] sm:$0xff]
        %v251 = vld [vmem:[%s214 + $0x8] sm:$0xff]
        %v252 = vmul.f32 %v250, %v250
        %v253 = vmul.f32 %v251, %v251
        %254 = vadd.xlane.f32.xlu0 %v252
        %v255 = vpop.xlane.xlu0 %254
        %256 = vadd.xlane.f32.xlu0 %v253
        %v257 = vpop.xlane.xlu0 %256
        %v258 = vadd.f32 %v255, 1e-12
        %v259 = vadd.f32 %v257, 1e-12
        %v260 = vrsqrt.pop %v258
        %v261 = vmul.f32 %v260, %v258
        %v262 = vmul.f32 %v261, %v260
        %v263 = vmul.f32 0.5, %v262
        %v264 = vsub.f32 1.5, %v263
        %v265 = vmul.f32 %v260, %v264
        %vm266 = vweird.f32 %v258
        %vm267 = vweird.f32 %v260
        %vm268 = vmor %vm266, %vm267
        %v269 = vsel %vm268, %v260, %v265
        %v270 = vrsqrt.pop %v259
        %v271 = vmul.f32 %v270, %v259
        %v272 = vmul.f32 %v271, %v270
        %v273 = vmul.f32 0.5, %v272
        %v274 = vsub.f32 1.5, %v273
        %v275 = vmul.f32 %v270, %v274
        %vm276 = vweird.f32 %v259
        %vm277 = vweird.f32 %v270
        %vm278 = vmor %vm276, %vm277
        %v279 = vsel %vm278, %v270, %v275
        %v280 = vmul.f32 %v250, %v269
        %v281 = vmul.f32 %v251, %v279
        %s282 = sld [smem:[#allocation3 + %s38]]
        %s283 = smul.u32 %s39, 16
        %v284 = vlaneseq
        %v285 = vshrl.u32 %v284, 7
        %v286 = vadd.s32 %v285, 8
        %v287 = vstv %s283
        %v288 = vadd.s32 %v287, %v285
        %v289 = vadd.s32 %v287, %v286
        %v290 = vstv %s282
        %vm291 = vcmp.lt.s32.totalorder %v288, %v290
        %vm292 = vcmp.lt.s32.totalorder %v289, %v290
        %v293 = vsel %vm291, 1, 0
        %v294 = vsel %vm292, 1, 0
        %v295 = vcvt.s32.f32 %v293
        %v296 = vcvt.s32.f32 %v294
        %v297 = vmul.f32 %v280, %v295
        %v298 = vmul.f32 %v281, %v296
        %v299 = vld [vmem:[#allocation7] sm:$0xff]
        %v300 = vld [vmem:[#allocation7 + $0x8] sm:$0xff]
        %v301 = vld [vmem:[#allocation7 + $0x10] sm:$0xff]
        %v302 = vld [vmem:[#allocation7 + $0x18] sm:$0xff]
        %v303 = vld [vmem:[#allocation7 + $0x20] sm:$0xff]
        %v304 = vld [vmem:[#allocation7 + $0x28] sm:$0xff]
        %v305 = vld [vmem:[#allocation7 + $0x30] sm:$0xff]
        %v306 = vld [vmem:[#allocation7 + $0x38] sm:$0xff]
        %v307 = vld [vmem:[#allocation7 + $0x40] sm:$0xff]
        %v308 = vld [vmem:[#allocation7 + $0x48] sm:$0xff]
        %v309 = vld [vmem:[#allocation7 + $0x50] sm:$0xff]
        %v310 = vld [vmem:[#allocation7 + $0x58] sm:$0xff]
        %v311 = vld [vmem:[#allocation7 + $0x60] sm:$0xff]
        %v312 = vld [vmem:[#allocation7 + $0x68] sm:$0xff]
        %v313 = vld [vmem:[#allocation7 + $0x70] sm:$0xff]
        %v314 = vld [vmem:[#allocation7 + $0x78] sm:$0xff]
        %v315 = vld [vmem:[#allocation7 + $0x80] sm:$0xff]
        %v316 = vld [vmem:[#allocation7 + $0x88] sm:$0xff]
        %v317 = vld [vmem:[#allocation7 + $0x90] sm:$0xff]
        %v318 = vld [vmem:[#allocation7 + $0x98] sm:$0xff]
        %v319 = vld [vmem:[#allocation7 + $0xa0] sm:$0xff]
        %v320 = vld [vmem:[#allocation7 + $0xa8] sm:$0xff]
        %v321 = vld [vmem:[#allocation7 + $0xb0] sm:$0xff]
        %v322 = vld [vmem:[#allocation7 + $0xb8] sm:$0xff]
        %v323 = vld [vmem:[#allocation7 + $0xc0] sm:$0xff]
        %v324 = vld [vmem:[#allocation7 + $0xc8] sm:$0xff]
        %v325 = vld [vmem:[#allocation7 + $0xd0] sm:$0xff]
        %v326 = vld [vmem:[#allocation7 + $0xd8] sm:$0xff]
        %v327 = vld [vmem:[#allocation7 + $0xe0] sm:$0xff]
        %v328 = vld [vmem:[#allocation7 + $0xe8] sm:$0xff]
        %v329 = vld [vmem:[#allocation7 + $0xf0] sm:$0xff]
        %v330 = vld [vmem:[#allocation7 + $0xf8] sm:$0xff]
        %331 = vmatpush.msra.mxu0 %v329
        %332 = vmatpush.msra.mxu0 %v327
        %333 = vmatpush.msra.mxu0 %v325
        %334 = vmatpush.msra.mxu0 %v323
        %335 = vmatpush.msra.mxu0 %v321
        %336 = vmatpush.msra.mxu0 %v319
        %337 = vmatpush.msra.mxu0 %v317
        %338 = vmatpush.msra.mxu0 %v315
        %339 = vmatpush.msra.mxu0 %v313
        %340 = vmatpush.msra.mxu0 %v311
        %341 = vmatpush.msra.mxu0 %v309
        %342 = vmatpush.msra.mxu0 %v307
        %343 = vmatpush.msra.mxu0 %v305
        %344 = vmatpush.msra.mxu0 %v303
        %345 = vmatpush.msra.mxu0 %v301
        %346 = vmatpush.msra.mxu0 %v299
        %347 = vmatmul.f32.gmra.mxu0 %v297
        %v348 = vpop.f32.mrf.mxu0
        %v349 = vadd.f32 0.0, %v348
        %350 = vmatmul.f32.gmra.mxu0 %v298
        %v351 = vpop.f32.mrf.mxu0
        %v352 = vadd.f32 0.0, %v351
        %353 = vdwg.mxu0
        %354 = vmatpush.msra.mxu0 %v330
        %355 = vmatpush.msra.mxu0 %v328
        %356 = vmatpush.msra.mxu0 %v326
        %357 = vmatpush.msra.mxu0 %v324
        %358 = vmatpush.msra.mxu0 %v322
        %359 = vmatpush.msra.mxu0 %v320
        %360 = vmatpush.msra.mxu0 %v318
        %361 = vmatpush.msra.mxu0 %v316
        %362 = vmatpush.msra.mxu0 %v314
        %363 = vmatpush.msra.mxu0 %v312
        %364 = vmatpush.msra.mxu0 %v310
        %365 = vmatpush.msra.mxu0 %v308
        %366 = vmatpush.msra.mxu0 %v306
        %367 = vmatpush.msra.mxu0 %v304
        %368 = vmatpush.msra.mxu0 %v302
        %369 = vmatpush.msra.mxu0 %v300
        %370 = vmatmul.f32.gmra.mxu0 %v297
        %v371 = vpop.f32.mrf.mxu0
        %v372 = vadd.f32 0.0, %v371
        %373 = vmatmul.f32.gmra.mxu0 %v298
        %v374 = vpop.f32.mrf.mxu0
        %v375 = vadd.f32 0.0, %v374
        %376 = vdwg.mxu0
        %377 = vst [vmem:[%s240] sm:$0xff] %v349
        %378 = vst [vmem:[%s240 + $0x8] sm:$0xff] %v352
        %s379 = scalar_lea.vmem %s240, 16 [#allocation9]
        %380 = vst [vmem:[%s379] sm:$0xff] %v372
        %381 = vst [vmem:[%s379 + $0x8] sm:$0xff] %v375
        %vm382 = vcmask 130048
        %v384 = vsel %vm382, 1.0, 0
        %386 = vmatpush.msra.mxu0 0.0
        %387 = vmatpush.msra.mxu0 0.0
        %388 = vmatpush.msra.mxu0 0.0
        %389 = vmatpush.msra.mxu0 0.0
        %390 = vmatpush.msra.mxu0 0.0
        %391 = vmatpush.msra.mxu0 0.0
        %392 = vmatpush.msra.mxu0 0.0
        %393 = vmatpush.msra.mxu0 0.0
        %394 = vmatpush.msra.mxu0 0.0
        %395 = vmatpush.msra.mxu0 0.0
        %396 = vmatpush.msra.mxu0 0.0
        %397 = vmatpush.msra.mxu0 0.0
        %398 = vmatpush.msra.mxu0 0.0
        %399 = vmatpush.msra.mxu0 0.0
        %400 = vmatpush.msra.mxu0 %v352
        %401 = vmatpush.msra.mxu0 %v349
        %402 = vmatmul.f32.gmra.mxu0 %v384
        %v403 = vpop.f32.mrf.mxu0
        %v404 = vadd.f32 0.0, %v403
        %405 = vdwg.mxu0
        %406 = vmatpush.msra.mxu0 0.0
        %407 = vmatpush.msra.mxu0 0.0
        %408 = vmatpush.msra.mxu0 0.0
        %409 = vmatpush.msra.mxu0 0.0
        %410 = vmatpush.msra.mxu0 0.0
        %411 = vmatpush.msra.mxu0 0.0
        %412 = vmatpush.msra.mxu0 0.0
        %413 = vmatpush.msra.mxu0 0.0
        %414 = vmatpush.msra.mxu0 0.0
        %415 = vmatpush.msra.mxu0 0.0
        %416 = vmatpush.msra.mxu0 0.0
        %417 = vmatpush.msra.mxu0 0.0
        %418 = vmatpush.msra.mxu0 0.0
        %419 = vmatpush.msra.mxu0 0.0
        %420 = vmatpush.msra.mxu0 %v375
        %421 = vmatpush.msra.mxu0 %v372
        %422 = vmatmul.f32.gmra.mxu0 %v384
        %v423 = vpop.f32.mrf.mxu0
        %v424 = vadd.f32 0.0, %v423
        %425 = vdwg.mxu0
        %v428 = vrot.slane %v424, 7
        %vm429 = vcmask 1040384
        %v430 = vsel %vm429, %v404, %v428
        %v432 = vlaneseq
        %vm433 = vcmp.ge.s32.totalorder %v432, 0
        %vm434 = vcmp.lt.s32.totalorder %v432, 256
        %vm435 = vmand %vm433, %vm434
        %436 = vst.msk [vmem:[%s247] sm:$0x3] %vm435, %v430
        %s437 = sand.u32 %s105, 1
        %s438 = scalar_lea.sflag [#allocation6], %s437
        %s439 = sand.u32 %s105, 1
        %s440 = smul.addr %s439, 32
        %s441 = scalar_lea.vmem [#allocation9], %s440
        %s442 = sand.u32 %s133, 1
        %s443 = scalar_lea.sflag [#allocation11], %s442
        %s444 = sand.u32 %s133, 1
        %s445 = smul.addr %s444, 2
        %s446 = scalar_lea.vmem [#allocation10], %s445
        // Predicated region
        $region37: #{tpu_custom_call.1} parent=27 // pred_check
          %p447 = pneg %p115
        $region38: #{tpu_custom_call.1} parent=27 // pred_check_branch
          %449 = sbr.rel (%p447) target = $region40
        $region39: #{tpu_custom_call.1} parent=27 // pred_region
          %s450 = smul.u32 2, %s39
          %452 = vsyncadd %s438, 0
          %s453 = smul.addr %s38, 4
          %s454 = sadd.s32 %s450, %s453
          %s455 = smul.addr %s454, 8
          %s456 = scalar_lea.hbm %s3, %s455
          %s457 = sshll.u32 %s441, 4
          %s458 = int_to_ptr.vmem [resolvable:$true] %s457
          %s459 = sshll.u32 %s456, 4
          %s460 = int_to_ptr.hbm [resolvable:$true] %s459
          %465 = dma.vmem_to_hbm [thread:$0]  %s458, 512, %s460, %s438, 128, 128, 8
        $region40: #{tpu_custom_call.1} parent=27 // pred_fallthru
          _
        // Predicated region
        $region41: #{tpu_custom_call.1} parent=27 // pred_check
          %p466 = pneg %p143
        $region42: #{tpu_custom_call.1} parent=27 // pred_check_branch
          %468 = sbr.rel (%p466) target = $region44
        $region43: #{tpu_custom_call.1} parent=27 // pred_region
          %470 = vsyncadd %s443, 0
          %s471 = smul.addr %s39, 2
          %s472 = smul.addr %s38, 2
          %s473 = sadd.s32 %s471, %s472
          %s474 = scalar_lea.hbm %s4, %s473
          %s476 = sshll.u32 %s446, 4
          %s477 = int_to_ptr.vmem [resolvable:$true] %s476
          %s478 = sshll.u32 %s474, 4
          %s479 = int_to_ptr.hbm [resolvable:$true] %s478
          %481 = dma.vmem_to_hbm [thread:$0]  %s477, 32, %s479, %s443
        $region44: #{tpu_custom_call.1} parent=27 // pred_fallthru
          _
      $region28: #{tpu_custom_call.1} parent=5 // pred_fallthru
        _
      %p482 = scmp.le.s32.totalorder 2, %s29
      // Predicated region
      $region45: #{tpu_custom_call.1} parent=5 // pred_check
        %p483 = pneg %p482
      $region46: #{tpu_custom_call.1} parent=5 // pred_check_branch
        %485 = sbr.rel (%p483) target = $region48
      $region47: #{tpu_custom_call.1} parent=5 // pred_region
        %s486 = ssub.s32 %s29, 2
        // Predicated region
        $region49: #{tpu_custom_call.1} parent=47 // pred_check
          %p487 = pneg %p121
        $region50: #{tpu_custom_call.1} parent=47 // pred_check_branch
          %489 = sbr.rel (%p487) target = $region52
        $region51: #{tpu_custom_call.1} parent=47 // pred_region
          %s490 = sand.u32 %s106, 1
          %s491 = scalar_lea.sflag [#allocation6], %s490
          %s492 = sand.u32 %s106, 1
          %s493 = smul.addr %s492, 32
          %s494 = scalar_lea.vmem [#allocation9], %s493
          %496 = dma.done %s491, 512
        $region52: #{tpu_custom_call.1} parent=47 // pred_fallthru
          _
        // Predicated region
        $region53: #{tpu_custom_call.1} parent=47 // pred_check
          %p497 = pneg %p149
        $region54: #{tpu_custom_call.1} parent=47 // pred_check_branch
          %499 = sbr.rel (%p497) target = $region56
        $region55: #{tpu_custom_call.1} parent=47 // pred_region
          %s500 = sand.u32 %s134, 1
          %s501 = scalar_lea.sflag [#allocation11], %s500
          %s502 = sand.u32 %s134, 1
          %s503 = smul.addr %s502, 2
          %s504 = scalar_lea.vmem [#allocation10], %s503
          %506 = dma.done %s501, 32
        $region56: #{tpu_custom_call.1} parent=47 // pred_fallthru
          _
      $region48: #{tpu_custom_call.1} parent=5 // pred_fallthru
        _
    $region6: #{tpu_custom_call.1} parent=1 // loop_footer
      %s33 = sadd.s32 1, %s29
    $region7: #{tpu_custom_call.1} parent=1 // loop_footer_branch
      %28 = sbr.rel target = $region3
    $region8: #{tpu_custom_call.1} parent=1 // loop_exit
      _
    %507 = vsyncpa [#allocation5], 1
    %s508 = scalar_lea.sflag [#allocation5], 1
    %509 = vsyncpa %s508, 1
    %510 = vsyncpa [#allocation8], 1
    %511 = vsyncpa [#allocation6], 1
    %s512 = scalar_lea.sflag [#allocation6], 1
    %513 = vsyncpa %s512, 1
    %514 = vsyncpa [#allocation11], 1
    %s515 = scalar_lea.sflag [#allocation11], 1
    %516 = vsyncpa %s515, 1

// kernel: tpu_custom_call.1
$region0: #{tpu_custom_call.1}
  #allocation0 [shape = 'u32[]', space=smem, size = 0x4, offset = 0x4, fixed_abs, tag = 'smem constant byte address 0x4 - core index']
  #allocation1 [shape = 'u32[72,128]{1,0:T(1,128)}', space=vmem, size = 0x9000, scoped, tag = 'internal scratch']
  #allocation2 [shape = 's32[1]{0}', space=sflag, size = 0x4, scoped, tag = 'scoped memory for tpu_custom_call.1']
  #allocation3 [shape = 'u8[512]{0}', space=smem, size = 0x200, scoped, tag = 'prefetched SMEM operand 0']
  %s0 = inlined_call_operand.hbm [shape: s32[2], index: 0, kind: input, shape index: {}]
  %s1 = inlined_call_operand.hbm [shape: f32[2,16,128], index: 1, kind: input, shape index: {}]
  %s2 = inlined_call_operand.hbm [shape: f32[128,256], index: 2, kind: input, shape index: {}]
  %s3 = inlined_call_operand.hbm [shape: f32[2,2,16,128], index: 3, kind: output, shape index: {0}]
  %s4 = inlined_call_operand.hbm [shape: f32[2,1,256], index: 4, kind: output, shape index: {1}]
  %5 = xla_tuple %s3, %s4
  %s6 = sld [smem:[#allocation0]]
  $region57: #{tpu_custom_call.1} parent=0
    _
  %s8 = ssub.s32 1, %s6
  %s9 = scalar_select 0, %s8, %s6
  %s11 = sshll.u32 %s0, 4
  %s12 = int_to_ptr.hbm [resolvable:$true] %s11
  %14 = dma.hbm_to_smem %s12, 16, [#allocation3], [#allocation2]
  %16 = dma.done [#allocation2], 16
  %17 = sfence
  $region1: #{tpu_custom_call.1} parent=0
    #allocation4 [shape = 'u8[16384]{0}', space=vmem, size = 0x4000, scoped, tag = 'input window, operand 1']
    #allocation5 [shape = 's32[2]{0}', space=sflag, size = 0x8, scoped, tag = 'scoped memory for tpu_custom_call.1']
    #allocation6 [shape = 's32[2]{0}', space=sflag, size = 0x8, scoped, tag = 'scoped memory for tpu_custom_call.1']
    #allocation7 [shape = 'u8[131072]{0}', space=vmem, size = 0x20000, scoped, tag = 'input window, operand 2, single buffered']
    #allocation8 [shape = 's32[1]{0}', space=sflag, size = 0x4, scoped, tag = 'scoped memory for tpu_custom_call.1']
    #allocation9 [shape = 'u8[32768]{0}', space=vmem, size = 0x8000, scoped, tag = 'output window, operand 0']
    #allocation10 [shape = 'u8[2048]{0}', space=vmem, size = 0x800, scoped, tag = 'output window, operand 1']
    #allocation11 [shape = 's32[2]{0}', space=sflag, size = 0x8, scoped, tag = 'scoped memory for tpu_custom_call.1']
    %18 = vsyncpa [#allocation5], 0
    %s19 = scalar_lea.sflag [#allocation5], 1
    %20 = vsyncpa %s19, 0
    %21 = vsyncpa [#allocation8], 0
    %22 = vsyncpa [#allocation6], 0
    %s23 = scalar_lea.sflag [#allocation6], 1
    %24 = vsyncpa %s23, 0
    %25 = vsyncpa [#allocation11], 0
    %s26 = scalar_lea.sflag [#allocation11], 1
    %27 = vsyncpa %s26, 0
    loop: start=0, step=1, limit=4
    $region2: #{tpu_custom_call.1} parent=1 // loop_pre_header
      _
    $region3: #{tpu_custom_call.1} parent=1 // loop_header
      %s29 = sphi 0, %s33
      %p30 = scmp.ge.s32.totalorder %s29, 4
      %s36 = sphi 0, %s48
      %s37 = sphi 0, %s44
      %s38 = sphi 0, %s36
      %s39 = sphi 0, %s37
      %s40 = sphi 0, %s38
      %s41 = sphi 0, %s39
      %s53 = sphi 0, %s55
      %s56 = sphi 0, %s53
      %s57 = sphi 0, %s56
      %s73 = sphi 0, %s57
      %s77 = sphi 0, %s77
      %s79 = sphi 0, %s77
      %s80 = sphi 0, %s79
      %s94 = sphi 0, %s80
      %s102 = sphi 0, %s104
      %s105 = sphi 0, %s102
      %s106 = sphi 0, %s105
      %s122 = sphi 0, %s106
      %s130 = sphi 0, %s132
      %s133 = sphi 0, %s130
      %s134 = sphi 0, %s133
      %s150 = sphi 0, %s134
    $region4: #{tpu_custom_call.1} parent=1 // loop_header_branch
      %32 = sbr.rel (%p30) target = $region8
    $region5: #{tpu_custom_call.1} parent=1 // loop_body
      %s34 = ssub.s32 %s29, 1
      %s35 = ssub.s32 %s29, 2
      %s42 = sadd.s32 1, %s37
      %p43 = scmp.ge.s32.totalorder %s42, 1
      %s44 = scalar_select %p43, 0, %s42
      %s45 = sadd.s32 1, %s36
      %s46 = scalar_select %p43, %s45, %s36
      %p47 = scmp.ge.s32.totalorder %s46, 2
      %s48 = scalar_select %p47, 0, %s46
      %s49 = ssub.s32 %s36, %s48
      %s50 = ssub.s32 %s37, %s44
      %s51 = sor.u32 %s49, %s50
      %p52 = scmp.eq.s32.totalorder %s51, 0
      %s54 = sadd.s32 %s53, 1
      %s55 = scalar_select %p52, %s53, %s54
      %p58 = pneg %p52
      %p59 = scmp.eq.s32.totalorder %s29, 1
      %p60 = por %p58, %p59
      %p61 = scmp.ne.s32.totalorder %s53, %s56
      %p62 = scmp.eq.s32.totalorder %s29, 0
      %p63 = por %p61, %p62
      %p64 = scmp.ne.s32.totalorder %s53, %s56
      %p65 = scmp.eq.s32.totalorder %s34, 1
      %p66 = por %p64, %p65
      %p67 = scmp.ne.s32.totalorder %s56, %s57
      %p68 = scmp.eq.s32.totalorder %s34, 0
      %p69 = por %p67, %p68
      %p70 = scmp.ne.s32.totalorder %s56, %s57
      %p71 = scmp.eq.s32.totalorder %s35, 1
      %p72 = por %p70, %p71
      %p74 = scmp.ne.s32.totalorder %s57, %s73
      %p75 = scmp.eq.s32.totalorder %s35, 0
      %p76 = por %p74, %p75
      %s78 = sadd.s32 %s77, 1
      %p81 = scmp.eq.s32.totalorder %s29, 1
      %p82 = scmp.ne.s32.totalorder %s77, %s79
      %p83 = scmp.eq.s32.totalorder %s29, 0
      %p84 = por %p82, %p83
      %p85 = scmp.ne.s32.totalorder %s77, %s79
      %p86 = scmp.eq.s32.totalorder %s34, 1
      %p87 = por %p85, %p86
      %p88 = scmp.ne.s32.totalorder %s79, %s80
      %p89 = scmp.eq.s32.totalorder %s34, 0
      %p90 = por %p88, %p89
      %p91 = scmp.ne.s32.totalorder %s79, %s80
      %p92 = scmp.eq.s32.totalorder %s35, 1
      %p93 = por %p91, %p92
      %p95 = scmp.ne.s32.totalorder %s80, %s94
      %p96 = scmp.eq.s32.totalorder %s35, 0
      %p97 = por %p95, %p96
      %s98 = ssub.s32 %s36, %s48
      %s99 = ssub.s32 %s37, %s44
      %s100 = sor.u32 %s98, %s99
      %p101 = scmp.eq.s32.totalorder %s100, 0
      %s103 = sadd.s32 %s102, 1
      %s104 = scalar_select %p101, %s102, %s103
      %p107 = pneg %p101
      %p108 = scmp.eq.s32.totalorder %s29, 1
      %p109 = por %p107, %p108
      %p110 = scmp.ne.s32.totalorder %s102, %s105
      %p111 = scmp.eq.s32.totalorder %s29, 0
      %p112 = por %p110, %p111
      %p113 = scmp.ne.s32.totalorder %s102, %s105
      %p114 = scmp.eq.s32.totalorder %s34, 1
      %p115 = por %p113, %p114
      %p116 = scmp.ne.s32.totalorder %s105, %s106
      %p117 = scmp.eq.s32.totalorder %s34, 0
      %p118 = por %p116, %p117
      %p119 = scmp.ne.s32.totalorder %s105, %s106
      %p120 = scmp.eq.s32.totalorder %s35, 1
      %p121 = por %p119, %p120
      %p123 = scmp.ne.s32.totalorder %s106, %s122
      %p124 = scmp.eq.s32.totalorder %s35, 0
      %p125 = por %p123, %p124
      %s126 = ssub.s32 %s36, %s48
      %s127 = ssub.s32 %s37, %s44
      %s128 = sor.u32 %s126, %s127
      %p129 = scmp.eq.s32.totalorder %s128, 0
      %s131 = sadd.s32 %s130, 1
      %s132 = scalar_select %p129, %s130, %s131
      %p135 = pneg %p129
      %p136 = scmp.eq.s32.totalorder %s29, 1
      %p137 = por %p135, %p136
      %p138 = scmp.ne.s32.totalorder %s130, %s133
      %p139 = scmp.eq.s32.totalorder %s29, 0
      %p140 = por %p138, %p139
      %p141 = scmp.ne.s32.totalorder %s130, %s133
      %p142 = scmp.eq.s32.totalorder %s34, 1
      %p143 = por %p141, %p142
      %p144 = scmp.ne.s32.totalorder %s133, %s134
      %p145 = scmp.eq.s32.totalorder %s34, 0
      %p146 = por %p144, %p145
      %p147 = scmp.ne.s32.totalorder %s133, %s134
      %p148 = scmp.eq.s32.totalorder %s35, 1
      %p149 = por %p147, %p148
      %p151 = scmp.ne.s32.totalorder %s134, %s150
      %p152 = scmp.eq.s32.totalorder %s35, 0
      %p153 = por %p151, %p152
      %p154 = scmp.le.s32.totalorder 1, %s29
      %p155 = scmp.lt.s32.totalorder %s29, 3
      %p156 = pnand %p154, %p155
      %p157 = pneg %p156
      // Predicated region
      $region9: #{tpu_custom_call.1} parent=5 // pred_check
        _
      $region10: #{tpu_custom_call.1} parent=5 // pred_check_branch
        %159 = sbr.rel (%p156) target = $region12
      $region11: #{tpu_custom_call.1} parent=5 // pred_region
        %s160 = ssub.s32 %s29, 1
        // Predicated region
        $region13: #{tpu_custom_call.1} parent=11 // pred_check
          %p161 = pneg %p90
        $region14: #{tpu_custom_call.1} parent=11 // pred_check_branch
          %163 = sbr.rel (%p161) target = $region16
        $region15: #{tpu_custom_call.1} parent=11 // pred_region
          %165 = vsyncadd [#allocation8], 0
          %s166 = sshll.u32 %s2, 4
          %s167 = int_to_ptr.hbm [resolvable:$true] %s166
          %s168 = sshll.u32 [#allocation7], 4
          %s169 = int_to_ptr.vmem [resolvable:$true] %s168
          %174 = dma.hbm_to_vmem [thread:$0]  %s167, 4096, %s169, [#allocation8], 256, 256, 16
        $region16: #{tpu_custom_call.1} parent=11 // pred_fallthru
          _
      $region12: #{tpu_custom_call.1} parent=5 // pred_fallthru
        _
      %p175 = scmp.lt.s32.totalorder %s29, 2
      // Predicated region
      $region17: #{tpu_custom_call.1} parent=5 // pred_check
        %p176 = pneg %p175
      $region18: #{tpu_custom_call.1} parent=5 // pred_check_branch
        %178 = sbr.rel (%p176) target = $region20
      $region19: #{tpu_custom_call.1} parent=5 // pred_region
        // Predicated region
        $region21: #{tpu_custom_call.1} parent=19 // pred_check
          %p179 = pneg %p63
        $region22: #{tpu_custom_call.1} parent=19 // pred_check_branch
          %181 = sbr.rel (%p179) target = $region24
        $region23: #{tpu_custom_call.1} parent=19 // pred_region
          %s182 = sand.u32 %s53, 1
          %s183 = scalar_lea.sflag [#allocation5], %s182
          %s184 = sand.u32 %s53, 1
          %s185 = smul.addr %s184, 16
          %s186 = scalar_lea.vmem [#allocation4], %s185
          %s187 = smul.u32 2, %s37
          %189 = vsyncadd %s183, 0
          %s190 = smul.addr %s36, 2
          %s191 = sadd.s32 %s187, %s190
          %s192 = smul.addr %s191, 8
          %s193 = scalar_lea.hbm %s1, %s192
          %s194 = sshll.u32 %s193, 4
          %s195 = int_to_ptr.hbm [resolvable:$true] %s194
          %s196 = sshll.u32 %s186, 4
          %s197 = int_to_ptr.vmem [resolvable:$true] %s196
          %202 = dma.hbm_to_vmem [thread:$0]  %s195, 256, %s197, %s183, 128, 128, 8
        $region24: #{tpu_custom_call.1} parent=19 // pred_fallthru
          _
      $region20: #{tpu_custom_call.1} parent=5 // pred_fallthru
        _
      %p203 = scmp.le.s32.totalorder 1, %s29
      %p204 = scmp.lt.s32.totalorder %s29, 3
      %p205 = pnand %p203, %p204
      %p206 = pneg %p205
      // Predicated region
      $region25: #{tpu_custom_call.1} parent=5 // pred_check
        _
      $region26: #{tpu_custom_call.1} parent=5 // pred_check_branch
        %208 = sbr.rel (%p205) target = $region28
      $region27: #{tpu_custom_call.1} parent=5 // pred_region
        %s209 = ssub.s32 %s29, 1
        %s210 = sand.u32 %s56, 1
        %s211 = scalar_lea.sflag [#allocation5], %s210
        %s212 = sand.u32 %s56, 1
        %s213 = smul.addr %s212, 16
        %s214 = scalar_lea.vmem [#allocation4], %s213
        // Predicated region
        $region29: #{tpu_custom_call.1} parent=27 // pred_check
          %p215 = pneg %p69
        $region30: #{tpu_custom_call.1} parent=27 // pred_check_branch
          %217 = sbr.rel (%p215) target = $region32
        $region31: #{tpu_custom_call.1} parent=27 // pred_region
          %219 = dma.done %s211, 256
        $region32: #{tpu_custom_call.1} parent=27 // pred_fallthru
          _
        // Predicated region
        $region33: #{tpu_custom_call.1} parent=27 // pred_check
          %p220 = pneg %p90
        $region34: #{tpu_custom_call.1} parent=27 // pred_check_branch
          %222 = sbr.rel (%p220) target = $region36
        $region35: #{tpu_custom_call.1} parent=27 // pred_region
          %224 = dma.done [#allocation8], 4096
        $region36: #{tpu_custom_call.1} parent=27 // pred_fallthru
          _
        %s225 = sand.u32 %s56, 1
        %s226 = scalar_lea.sflag [#allocation5], %s225
        %s227 = sand.u32 %s56, 1
        %s228 = smul.addr %s227, 16
        %s229 = scalar_lea.vmem [#allocation4], %s228
        %p230 = pneg %p69
        %p231 = pneg %p66
        %p232 = pneg %p90
        %p233 = pneg %p87
        %p234 = pneg %p118
        %p235 = pneg %p115
        %s236 = sand.u32 %s105, 1
        %s237 = scalar_lea.sflag [#allocation6], %s236
        %s238 = sand.u32 %s105, 1
        %s239 = smul.addr %s238, 32
        %s240 = scalar_lea.vmem [#allocation9], %s239
        %p241 = pneg %p146
        %p242 = pneg %p143
        %s243 = sand.u32 %s133, 1
        %s244 = scalar_lea.sflag [#allocation11], %s243
        %s245 = sand.u32 %s133, 1
        %s246 = smul.addr %s245, 2
        %s247 = scalar_lea.vmem [#allocation10], %s246
        %s248 = smul.u32 2, %s39
        %s249 = smul.u32 2, %s39
        %v250 = vld [vmem:[%s214] sm:$0xff]
        %v251 = vld [vmem:[%s214 + $0x8] sm:$0xff]
        %v252 = vmul.f32 %v250, %v250
        %v253 = vmul.f32 %v251, %v251
        %254 = vadd.xlane.f32.xlu0 %v252
        %v255 = vpop.xlane.xlu0 %254
        %256 = vadd.xlane.f32.xlu0 %v253
        %v257 = vpop.xlane.xlu0 %256
        %v258 = vadd.f32 %v255, 1e-12
        %v259 = vadd.f32 %v257, 1e-12
        %v260 = vrsqrt.pop %v258
        %v261 = vmul.f32 %v260, %v258
        %v262 = vmul.f32 %v261, %v260
        %v263 = vmul.f32 0.5, %v262
        %v264 = vsub.f32 1.5, %v263
        %v265 = vmul.f32 %v260, %v264
        %vm266 = vweird.f32 %v258
        %vm267 = vweird.f32 %v260
        %vm268 = vmor %vm266, %vm267
        %v269 = vsel %vm268, %v260, %v265
        %v270 = vrsqrt.pop %v259
        %v271 = vmul.f32 %v270, %v259
        %v272 = vmul.f32 %v271, %v270
        %v273 = vmul.f32 0.5, %v272
        %v274 = vsub.f32 1.5, %v273
        %v275 = vmul.f32 %v270, %v274
        %vm276 = vweird.f32 %v259
        %vm277 = vweird.f32 %v270
        %vm278 = vmor %vm276, %vm277
        %v279 = vsel %vm278, %v270, %v275
        %v280 = vmul.f32 %v250, %v269
        %v281 = vmul.f32 %v251, %v279
        %s282 = sld [smem:[#allocation3 + %s38]]
        %s283 = smul.u32 %s39, 16
        %v284 = vlaneseq
        %v285 = vshrl.u32 %v284, 7
        %v286 = vadd.s32 %v285, 8
        %v287 = vstv %s283
        %v288 = vadd.s32 %v287, %v285
        %v289 = vadd.s32 %v287, %v286
        %v290 = vstv %s282
        %vm291 = vcmp.lt.s32.totalorder %v288, %v290
        %vm292 = vcmp.lt.s32.totalorder %v289, %v290
        %v293 = vsel %vm291, 1, 0
        %v294 = vsel %vm292, 1, 0
        %v295 = vcvt.s32.f32 %v293
        %v296 = vcvt.s32.f32 %v294
        %v297 = vmul.f32 %v280, %v295
        %v298 = vmul.f32 %v281, %v296
        %v299 = vld [vmem:[#allocation7] sm:$0xff]
        %v300 = vld [vmem:[#allocation7 + $0x8] sm:$0xff]
        %v301 = vld [vmem:[#allocation7 + $0x10] sm:$0xff]
        %v302 = vld [vmem:[#allocation7 + $0x18] sm:$0xff]
        %v303 = vld [vmem:[#allocation7 + $0x20] sm:$0xff]
        %v304 = vld [vmem:[#allocation7 + $0x28] sm:$0xff]
        %v305 = vld [vmem:[#allocation7 + $0x30] sm:$0xff]
        %v306 = vld [vmem:[#allocation7 + $0x38] sm:$0xff]
        %v307 = vld [vmem:[#allocation7 + $0x40] sm:$0xff]
        %v308 = vld [vmem:[#allocation7 + $0x48] sm:$0xff]
        %v309 = vld [vmem:[#allocation7 + $0x50] sm:$0xff]
        %v310 = vld [vmem:[#allocation7 + $0x58] sm:$0xff]
        %v311 = vld [vmem:[#allocation7 + $0x60] sm:$0xff]
        %v312 = vld [vmem:[#allocation7 + $0x68] sm:$0xff]
        %v313 = vld [vmem:[#allocation7 + $0x70] sm:$0xff]
        %v314 = vld [vmem:[#allocation7 + $0x78] sm:$0xff]
        %v315 = vld [vmem:[#allocation7 + $0x80] sm:$0xff]
        %v316 = vld [vmem:[#allocation7 + $0x88] sm:$0xff]
        %v317 = vld [vmem:[#allocation7 + $0x90] sm:$0xff]
        %v318 = vld [vmem:[#allocation7 + $0x98] sm:$0xff]
        %v319 = vld [vmem:[#allocation7 + $0xa0] sm:$0xff]
        %v320 = vld [vmem:[#allocation7 + $0xa8] sm:$0xff]
        %v321 = vld [vmem:[#allocation7 + $0xb0] sm:$0xff]
        %v322 = vld [vmem:[#allocation7 + $0xb8] sm:$0xff]
        %v323 = vld [vmem:[#allocation7 + $0xc0] sm:$0xff]
        %v324 = vld [vmem:[#allocation7 + $0xc8] sm:$0xff]
        %v325 = vld [vmem:[#allocation7 + $0xd0] sm:$0xff]
        %v326 = vld [vmem:[#allocation7 + $0xd8] sm:$0xff]
        %v327 = vld [vmem:[#allocation7 + $0xe0] sm:$0xff]
        %v328 = vld [vmem:[#allocation7 + $0xe8] sm:$0xff]
        %v329 = vld [vmem:[#allocation7 + $0xf0] sm:$0xff]
        %v330 = vld [vmem:[#allocation7 + $0xf8] sm:$0xff]
        %331 = vmatpush.msra.mxu0 %v329
        %332 = vmatpush.msra.mxu0 %v327
        %333 = vmatpush.msra.mxu0 %v325
        %334 = vmatpush.msra.mxu0 %v323
        %335 = vmatpush.msra.mxu0 %v321
        %336 = vmatpush.msra.mxu0 %v319
        %337 = vmatpush.msra.mxu0 %v317
        %338 = vmatpush.msra.mxu0 %v315
        %339 = vmatpush.msra.mxu0 %v313
        %340 = vmatpush.msra.mxu0 %v311
        %341 = vmatpush.msra.mxu0 %v309
        %342 = vmatpush.msra.mxu0 %v307
        %343 = vmatpush.msra.mxu0 %v305
        %344 = vmatpush.msra.mxu0 %v303
        %345 = vmatpush.msra.mxu0 %v301
        %346 = vmatpush.msra.mxu0 %v299
        %347 = vmatmul.f32.gmra.mxu0 %v297
        %v348 = vpop.f32.mrf.mxu0
        %v349 = vadd.f32 0.0, %v348
        %350 = vmatmul.f32.gmra.mxu0 %v298
        %v351 = vpop.f32.mrf.mxu0
        %v352 = vadd.f32 0.0, %v351
        %353 = vdwg.mxu0
        %354 = vmatpush.msra.mxu0 %v330
        %355 = vmatpush.msra.mxu0 %v328
        %356 = vmatpush.msra.mxu0 %v326
        %357 = vmatpush.msra.mxu0 %v324
        %358 = vmatpush.msra.mxu0 %v322
        %359 = vmatpush.msra.mxu0 %v320
        %360 = vmatpush.msra.mxu0 %v318
        %361 = vmatpush.msra.mxu0 %v316
        %362 = vmatpush.msra.mxu0 %v314
        %363 = vmatpush.msra.mxu0 %v312
        %364 = vmatpush.msra.mxu0 %v310
        %365 = vmatpush.msra.mxu0 %v308
        %366 = vmatpush.msra.mxu0 %v306
        %367 = vmatpush.msra.mxu0 %v304
        %368 = vmatpush.msra.mxu0 %v302
        %369 = vmatpush.msra.mxu0 %v300
        %370 = vmatmul.f32.gmra.mxu0 %v297
        %v371 = vpop.f32.mrf.mxu0
        %v372 = vadd.f32 0.0, %v371
        %373 = vmatmul.f32.gmra.mxu0 %v298
        %v374 = vpop.f32.mrf.mxu0
        %v375 = vadd.f32 0.0, %v374
        %376 = vdwg.mxu0
        %377 = vst [vmem:[%s240] sm:$0xff] %v349
        %378 = vst [vmem:[%s240 + $0x8] sm:$0xff] %v352
        %s379 = scalar_lea.vmem %s240, 16 [#allocation9]
        %380 = vst [vmem:[%s379] sm:$0xff] %v372
        %381 = vst [vmem:[%s379 + $0x8] sm:$0xff] %v375
        %vm382 = vcmask 130048
        %v384 = vsel %vm382, 1.0, 0
        %386 = vmatpush.msra.mxu0 0.0
        %387 = vmatpush.msra.mxu0 0.0
        %388 = vmatpush.msra.mxu0 0.0
        %389 = vmatpush.msra.mxu0 0.0
        %390 = vmatpush.msra.mxu0 0.0
        %391 = vmatpush.msra.mxu0 0.0
        %392 = vmatpush.msra.mxu0 0.0
        %393 = vmatpush.msra.mxu0 0.0
        %394 = vmatpush.msra.mxu0 0.0
        %395 = vmatpush.msra.mxu0 0.0
        %396 = vmatpush.msra.mxu0 0.0
        %397 = vmatpush.msra.mxu0 0.0
        %398 = vmatpush.msra.mxu0 0.0
        %399 = vmatpush.msra.mxu0 0.0
        %400 = vmatpush.msra.mxu0 %v352
        %401 = vmatpush.msra.mxu0 %v349
        %402 = vmatmul.f32.gmra.mxu0 %v384
        %v403 = vpop.f32.mrf.mxu0
        %v404 = vadd.f32 0.0, %v403
        %405 = vdwg.mxu0
        %406 = vmatpush.msra.mxu0 0.0
        %407 = vmatpush.msra.mxu0 0.0
        %408 = vmatpush.msra.mxu0 0.0
        %409 = vmatpush.msra.mxu0 0.0
        %410 = vmatpush.msra.mxu0 0.0
        %411 = vmatpush.msra.mxu0 0.0
        %412 = vmatpush.msra.mxu0 0.0
        %413 = vmatpush.msra.mxu0 0.0
        %414 = vmatpush.msra.mxu0 0.0
        %415 = vmatpush.msra.mxu0 0.0
        %416 = vmatpush.msra.mxu0 0.0
        %417 = vmatpush.msra.mxu0 0.0
        %418 = vmatpush.msra.mxu0 0.0
        %419 = vmatpush.msra.mxu0 0.0
        %420 = vmatpush.msra.mxu0 %v375
        %421 = vmatpush.msra.mxu0 %v372
        %422 = vmatmul.f32.gmra.mxu0 %v384
        %v423 = vpop.f32.mrf.mxu0
        %v424 = vadd.f32 0.0, %v423
        %425 = vdwg.mxu0
        %v428 = vrot.slane %v424, 7
        %vm429 = vcmask 1040384
        %v430 = vsel %vm429, %v404, %v428
        %v432 = vlaneseq
        %vm433 = vcmp.ge.s32.totalorder %v432, 0
        %vm434 = vcmp.lt.s32.totalorder %v432, 256
        %vm435 = vmand %vm433, %vm434
        %436 = vst.msk [vmem:[%s247] sm:$0x3] %vm435, %v430
        %s437 = sand.u32 %s105, 1
        %s438 = scalar_lea.sflag [#allocation6], %s437
        %s439 = sand.u32 %s105, 1
        %s440 = smul.addr %s439, 32
        %s441 = scalar_lea.vmem [#allocation9], %s440
        %s442 = sand.u32 %s133, 1
        %s443 = scalar_lea.sflag [#allocation11], %s442
        %s444 = sand.u32 %s133, 1
        %s445 = smul.addr %s444, 2
        %s446 = scalar_lea.vmem [#allocation10], %s445
        // Predicated region
        $region37: #{tpu_custom_call.1} parent=27 // pred_check
          %p447 = pneg %p115
        $region38: #{tpu_custom_call.1} parent=27 // pred_check_branch
          %449 = sbr.rel (%p447) target = $region40
        $region39: #{tpu_custom_call.1} parent=27 // pred_region
          %s450 = smul.u32 2, %s39
          %452 = vsyncadd %s438, 0
          %s453 = smul.addr %s38, 4
          %s454 = sadd.s32 %s450, %s453
          %s455 = smul.addr %s454, 8
          %s456 = scalar_lea.hbm %s3, %s455
          %s457 = sshll.u32 %s441, 4
          %s458 = int_to_ptr.vmem [resolvable:$true] %s457
          %s459 = sshll.u32 %s456, 4
          %s460 = int_to_ptr.hbm [resolvable:$true] %s459
          %465 = dma.vmem_to_hbm [thread:$0]  %s458, 512, %s460, %s438, 128, 128, 8
        $region40: #{tpu_custom_call.1} parent=27 // pred_fallthru
          _
        // Predicated region
        $region41: #{tpu_custom_call.1} parent=27 // pred_check
          %p466 = pneg %p143
        $region42: #{tpu_custom_call.1} parent=27 // pred_check_branch
          %468 = sbr.rel (%p466) target = $region44
        $region43: #{tpu_custom_call.1} parent=27 // pred_region
          %470 = vsyncadd %s443, 0
          %s471 = smul.addr %s39, 2
          %s472 = smul.addr %s38, 2
          %s473 = sadd.s32 %s471, %s472
          %s474 = scalar_lea.hbm %s4, %s473
          %s476 = sshll.u32 %s446, 4
          %s477 = int_to_ptr.vmem [resolvable:$true] %s476
          %s478 = sshll.u32 %s474, 4
          %s479 = int_to_ptr.hbm [resolvable:$true] %s478
          %481 = dma.vmem_to_hbm [thread:$0]  %s477, 32, %s479, %s443
        $region44: #{tpu_custom_call.1} parent=27 // pred_fallthru
          _
      $region28: #{tpu_custom_call.1} parent=5 // pred_fallthru
        _
      %p482 = scmp.le.s32.totalorder 2, %s29
      // Predicated region
      $region45: #{tpu_custom_call.1} parent=5 // pred_check
        %p483 = pneg %p482
      $region46: #{tpu_custom_call.1} parent=5 // pred_check_branch
        %485 = sbr.rel (%p483) target = $region48
      $region47: #{tpu_custom_call.1} parent=5 // pred_region
        %s486 = ssub.s32 %s29, 2
        // Predicated region
        $region49: #{tpu_custom_call.1} parent=47 // pred_check
          %p487 = pneg %p121
        $region50: #{tpu_custom_call.1} parent=47 // pred_check_branch
          %489 = sbr.rel (%p487) target = $region52
        $region51: #{tpu_custom_call.1} parent=47 // pred_region
          %s490 = sand.u32 %s106, 1
          %s491 = scalar_lea.sflag [#allocation6], %s490
          %s492 = sand.u32 %s106, 1
          %s493 = smul.addr %s492, 32
          %s494 = scalar_lea.vmem [#allocation9], %s493
          %496 = dma.done %s491, 512
        $region52: #{tpu_custom_call.1} parent=47 // pred_fallthru
          _
        // Predicated region
        $region53: #{tpu_custom_call.1} parent=47 // pred_check
          %p497 = pneg %p149
        $region54: #{tpu_custom_call.1} parent=47 // pred_check_branch
          %499 = sbr.rel (%p497) target = $region56
        $region55: #{tpu_custom_call.1} parent=47 // pred_region
          %s500 = sand.u32 %s134, 1
          %s501 = scalar_lea.sflag [#allocation11], %s500
          %s502 = sand.u32 %s134, 1
          %s503 = smul.addr %s502, 2
          %s504 = scalar_lea.vmem [#allocation10], %s503
          %506 = dma.done %s501, 32
        $region56: #{tpu_custom_call.1} parent=47 // pred_fallthru
          _
      $region48: #{tpu_custom_call.1} parent=5 // pred_fallthru
        _
    $region6: #{tpu_custom_call.1} parent=1 // loop_footer
      %s33 = sadd.s32 1, %s29
    $region7: #{tpu_custom_call.1} parent=1 // loop_footer_branch
      %28 = sbr.rel target = $region3
    $region8: #{tpu_custom_call.1} parent=1 // loop_exit
      _
    %507 = vsyncpa [#allocation5], 1
    %s508 = scalar_lea.sflag [#allocation5], 1
    %509 = vsyncpa %s508, 1
    %510 = vsyncpa [#allocation8], 1
    %511 = vsyncpa [#allocation6], 1
    %s512 = scalar_lea.sflag [#allocation6], 1
    %513 = vsyncpa %s512, 1
    %514 = vsyncpa [#allocation11], 1
    %s515 = scalar_lea.sflag [#allocation11], 1
    %516 = vsyncpa %s515, 1

</llo_original>
